<compile_context>
chip_gen: v5e
topology: v5e:2x2
jax: 0.10.0
libtpu: 0.0.40
codegen_flags: <defaults>
</compile_context>

<pallas_src>
import numpy as np
import jax
import jax.numpy as jnp
from jax.experimental import pallas as pl
from jax.experimental.pallas import tpu as pltpu


# -----------------------------------------------------------------------------
# Electron-configuration table (identical to the PyTorch tensor in __init__).
# -----------------------------------------------------------------------------
_ELECTRON_CONFIG = np.array([
 [0,0,0,0,0,0,0,0,0,0,0,0,0,0,0,0,0,0,0,0],
 [1,1,0,0,0,0,0,0,0,0,0,0,0,0,0,0,1,0,0,0],
 [2,2,0,0,0,0,0,0,0,0,0,0,0,0,0,0,2,0,0,0],
 [3,2,1,0,0,0,0,0,0,0,0,0,0,0,0,0,1,0,0,0],
 [4,2,2,0,0,0,0,0,0,0,0,0,0,0,0,0,2,0,0,0],
 [5,2,2,1,0,0,0,0,0,0,0,0,0,0,0,0,2,1,0,0],
 [6,2,2,2,0,0,0,0,0,0,0,0,0,0,0,0,2,2,0,0],
 [7,2,2,3,0,0,0,0,0,0,0,0,0,0,0,0,2,3,0,0],
 [8,2,2,4,0,0,0,0,0,0,0,0,0,0,0,0,2,4,0,0],
 [9,2,2,5,0,0,0,0,0,0,0,0,0,0,0,0,2,5,0,0],
 [10,2,2,6,0,0,0,0,0,0,0,0,0,0,0,0,2,6,0,0],
 [11,2,2,6,1,0,0,0,0,0,0,0,0,0,0,0,1,0,0,0],
 [12,2,2,6,2,0,0,0,0,0,0,0,0,0,0,0,2,0,0,0],
 [13,2,2,6,2,1,0,0,0,0,0,0,0,0,0,0,2,1,0,0],
 [14,2,2,6,2,2,0,0,0,0,0,0,0,0,0,0,2,2,0,0],
 [15,2,2,6,2,3,0,0,0,0,0,0,0,0,0,0,2,3,0,0],
 [16,2,2,6,2,4,0,0,0,0,0,0,0,0,0,0,2,4,0,0],
 [17,2,2,6,2,5,0,0,0,0,0,0,0,0,0,0,2,5,0,0],
 [18,2,2,6,2,6,0,0,0,0,0,0,0,0,0,0,2,6,0,0],
 [19,2,2,6,2,6,1,0,0,0,0,0,0,0,0,0,1,0,0,0],
 [20,2,2,6,2,6,2,0,0,0,0,0,0,0,0,0,2,0,0,0],
 [21,2,2,6,2,6,2,1,0,0,0,0,0,0,0,0,2,0,1,0],
 [22,2,2,6,2,6,2,2,0,0,0,0,0,0,0,0,2,0,2,0],
 [23,2,2,6,2,6,2,3,0,0,0,0,0,0,0,0,2,0,3,0],
 [24,2,2,6,2,6,1,5,0,0,0,0,0,0,0,0,1,0,5,0],
 [25,2,2,6,2,6,2,5,0,0,0,0,0,0,0,0,2,0,5,0],
 [26,2,2,6,2,6,2,6,0,0,0,0,0,0,0,0,2,0,6,0],
 [27,2,2,6,2,6,2,7,0,0,0,0,0,0,0,0,2,0,7,0],
 [28,2,2,6,2,6,2,8,0,0,0,0,0,0,0,0,2,0,8,0],
 [29,2,2,6,2,6,1,10,0,0,0,0,0,0,0,0,1,0,10,0],
 [30,2,2,6,2,6,2,10,0,0,0,0,0,0,0,0,2,0,10,0],
 [31,2,2,6,2,6,2,10,1,0,0,0,0,0,0,0,2,1,10,0],
 [32,2,2,6,2,6,2,10,2,0,0,0,0,0,0,0,2,2,10,0],
 [33,2,2,6,2,6,2,10,3,0,0,0,0,0,0,0,2,3,10,0],
 [34,2,2,6,2,6,2,10,4,0,0,0,0,0,0,0,2,4,10,0],
 [35,2,2,6,2,6,2,10,5,0,0,0,0,0,0,0,2,5,10,0],
 [36,2,2,6,2,6,2,10,6,0,0,0,0,0,0,0,2,6,10,0],
 [37,2,2,6,2,6,2,10,6,1,0,0,0,0,0,0,1,0,0,0],
 [38,2,2,6,2,6,2,10,6,2,0,0,0,0,0,0,2,0,0,0],
 [39,2,2,6,2,6,2,10,6,2,1,0,0,0,0,0,2,0,1,0],
 [40,2,2,6,2,6,2,10,6,2,2,0,0,0,0,0,2,0,2,0],
 [41,2,2,6,2,6,2,10,6,1,4,0,0,0,0,0,1,0,4,0],
 [42,2,2,6,2,6,2,10,6,1,5,0,0,0,0,0,1,0,5,0],
 [43,2,2,6,2,6,2,10,6,2,5,0,0,0,0,0,2,0,5,0],
 [44,2,2,6,2,6,2,10,6,1,7,0,0,0,0,0,1,0,7,0],
 [45,2,2,6,2,6,2,10,6,1,8,0,0,0,0,0,1,0,8,0],
 [46,2,2,6,2,6,2,10,6,0,10,0,0,0,0,0,0,0,10,0],
 [47,2,2,6,2,6,2,10,6,1,10,0,0,0,0,0,1,0,10,0],
 [48,2,2,6,2,6,2,10,6,2,10,0,0,0,0,0,2,0,10,0],
 [49,2,2,6,2,6,2,10,6,2,10,1,0,0,0,0,2,1,10,0],
 [50,2,2,6,2,6,2,10,6,2,10,2,0,0,0,0,2,2,10,0],
 [51,2,2,6,2,6,2,10,6,2,10,3,0,0,0,0,2,3,10,0],
 [52,2,2,6,2,6,2,10,6,2,10,4,0,0,0,0,2,4,10,0],
 [53,2,2,6,2,6,2,10,6,2,10,5,0,0,0,0,2,5,10,0],
 [54,2,2,6,2,6,2,10,6,2,10,6,0,0,0,0,2,6,10,0],
 [55,2,2,6,2,6,2,10,6,2,10,6,1,0,0,0,1,0,0,0],
 [56,2,2,6,2,6,2,10,6,2,10,6,2,0,0,0,2,0,0,0],
 [57,2,2,6,2,6,2,10,6,2,10,6,2,0,1,0,2,0,1,0],
 [58,2,2,6,2,6,2,10,6,2,10,6,2,1,1,0,2,0,1,1],
 [59,2,2,6,2,6,2,10,6,2,10,6,2,3,0,0,2,0,0,3],
 [60,2,2,6,2,6,2,10,6,2,10,6,2,4,0,0,2,0,0,4],
 [61,2,2,6,2,6,2,10,6,2,10,6,2,5,0,0,2,0,0,5],
 [62,2,2,6,2,6,2,10,6,2,10,6,2,6,0,0,2,0,0,6],
 [63,2,2,6,2,6,2,10,6,2,10,6,2,7,0,0,2,0,0,7],
 [64,2,2,6,2,6,2,10,6,2,10,6,2,7,1,0,2,0,1,7],
 [65,2,2,6,2,6,2,10,6,2,10,6,2,9,0,0,2,0,0,9],
 [66,2,2,6,2,6,2,10,6,2,10,6,2,10,0,0,2,0,0,10],
 [67,2,2,6,2,6,2,10,6,2,10,6,2,11,0,0,2,0,0,11],
 [68,2,2,6,2,6,2,10,6,2,10,6,2,12,0,0,2,0,0,12],
 [69,2,2,6,2,6,2,10,6,2,10,6,2,13,0,0,2,0,0,13],
 [70,2,2,6,2,6,2,10,6,2,10,6,2,14,0,0,2,0,0,14],
 [71,2,2,6,2,6,2,10,6,2,10,6,2,14,1,0,2,0,1,14],
 [72,2,2,6,2,6,2,10,6,2,10,6,2,14,2,0,2,0,2,14],
 [73,2,2,6,2,6,2,10,6,2,10,6,2,14,3,0,2,0,3,14],
 [74,2,2,6,2,6,2,10,6,2,10,6,2,14,4,0,2,0,4,14],
 [75,2,2,6,2,6,2,10,6,2,10,6,2,14,5,0,2,0,5,14],
 [76,2,2,6,2,6,2,10,6,2,10,6,2,14,6,0,2,0,6,14],
 [77,2,2,6,2,6,2,10,6,2,10,6,2,14,7,0,2,0,7,14],
 [78,2,2,6,2,6,2,10,6,2,10,6,1,14,9,0,1,0,9,14],
 [79,2,2,6,2,6,2,10,6,2,10,6,1,14,10,0,1,0,10,14],
 [80,2,2,6,2,6,2,10,6,2,10,6,2,14,10,0,2,0,10,14],
 [81,2,2,6,2,6,2,10,6,2,10,6,2,14,10,1,2,1,10,14],
 [82,2,2,6,2,6,2,10,6,2,10,6,2,14,10,2,2,2,10,14],
 [83,2,2,6,2,6,2,10,6,2,10,6,2,14,10,3,2,3,10,14],
 [84,2,2,6,2,6,2,10,6,2,10,6,2,14,10,4,2,4,10,14],
 [85,2,2,6,2,6,2,10,6,2,10,6,2,14,10,5,2,5,10,14],
 [86,2,2,6,2,6,2,10,6,2,10,6,2,14,10,6,2,6,10,14]], dtype=np.float32)


_LANE = 128            # TPU lane width — last dim of each tile is a multiple
_MAX_TILE_E = 8192     # edges per grid step (sweepable 2048-16384; ~0.7 MB
                       # VMEM with double-buffering, safe on all scoped limits)


def _round_up(x, m):
    return ((x + m - 1) // m) * m


# -----------------------------------------------------------------------------
# Edge-geometry kernel (lane-dense layout: xyz on sublanes, edges on lanes).
#   inputs : pos_jT, pos_iT  (3, TILE_E) f32
#   outputs: vecT            (3, TILE_E) f32   = pos_j - pos_i  (transposed)
#            dist            (1, TILE_E) f32   = ||pos_j - pos_i||_2
# -----------------------------------------------------------------------------
def _edge_geometry_kernel(pos_j_ref, pos_i_ref, vec_ref, dist_ref):
    diff = pos_j_ref[...] - pos_i_ref[...]            # (3, TILE_E) — VPU only
    vec_ref[...] = diff                               # full-lane unmasked store
    # Explicit component math: stays in VPU slots; sqrt goes to the EUP slot.
    d0 = diff[0:1, :]
    d1 = diff[1:2, :]
    d2 = diff[2:3, :]
    dist_ref[...] = jnp.sqrt(d0 * d0 + d1 * d1 + d2 * d2)   # (1, TILE_E)


@jax.jit
def _edge_geometry(pos, j, i):
    """distance_vec (E,3) and edge_dist (E,) for edges j->i, via a tiled,
    lane-dense Pallas kernel.  Gather + pad + transpose are XLA glue fused
    around the custom call under jit."""
    E = int(j.shape[0])
    tile_e = min(_MAX_TILE_E, _round_up(max(E, 1), _LANE))
    e_pad = _round_up(max(E, 1), tile_e)
    pad = e_pad - E

    # Pad indices with 0: padded edges compute pos[0]-pos[0]=0 and are sliced
    # off below — guarantees in-bounds tiles without masking inside the kernel.
    j_pad = jnp.pad(j.astype(jnp.int32), (0, pad))
    i_pad = jnp.pad(i.astype(jnp.int32), (0, pad))

    pos_t = pos.astype(jnp.float32).T                 # (3, N)
    pos_j_t = jnp.take(pos_t, j_pad, axis=1)          # (3, E_pad)
    pos_i_t = jnp.take(pos_t, i_pad, axis=1)          # (3, E_pad)

    grid = (e_pad // tile_e,)
    vec_t, dist_t = pl.pallas_call(
        _edge_geometry_kernel,
        out_shape=(
            jax.ShapeDtypeStruct((3, e_pad), jnp.float32),
            jax.ShapeDtypeStruct((1, e_pad), jnp.float32),
        ),
        grid=grid,
        in_specs=[
            pl.BlockSpec((3, tile_e), lambda e: (0, e)),
            pl.BlockSpec((3, tile_e), lambda e: (0, e)),
        ],
        out_specs=(
            pl.BlockSpec((3, tile_e), lambda e: (0, e)),
            pl.BlockSpec((1, tile_e), lambda e: (0, e)),
        ),
        compiler_params=pltpu.CompilerParams(
            dimension_semantics=("parallel",),        # megacore shard on v7x
        ),
    )(pos_j_t, pos_i_t)

    distance_vec = vec_t[:, :E].T                     # back to public (E, 3)
    edge_dist = dist_t[0, :E]                         # (E,)
    return distance_vec, edge_dist


# -----------------------------------------------------------------------------
# BaseModel equivalent
# -----------------------------------------------------------------------------
class BaseModelJAX:
    def __init__(self, num_atoms=None, bond_feat_dim=None, num_targets=None):
        self.num_atoms = num_atoms
        self.bond_feat_dim = bond_feat_dim
        self.num_targets = num_targets
        # One-time 87x20 normalization: plain numpy (matches PyTorch
        # int-tensor / int-row -> float semantics; last row has no zeros).
        ec = _ELECTRON_CONFIG
        self.electron_configs = jnp.asarray(ec / ec[-1, :], dtype=jnp.float32)

    def generate_graph(self, pos, edge_index, batch, num_graphs):
        """Non-PBC, otf_graph=False path of BaseModel.generate_graph.

        pos:        (N, 3) float32
        edge_index: (2, E) int32   — row 0 = j (source), row 1 = i (target)
        batch:      (N,)   int32   — graph id per atom
        """
        j, i = edge_index[0], edge_index[1]
        distance_vec, edge_dist = _edge_geometry(pos, j, i)

        E = edge_index.shape[1]
        # Kept for API fidelity with the PyTorch module (pure zeros in the
        # non-PBC path); downstream code that ignores them pays nothing.
        cell_offsets = jnp.zeros((E, 3), dtype=jnp.float32)
        cell_offset_distances = jnp.zeros((E, 3), dtype=jnp.float32)
        # compute_neighbors: number of edges per graph (count over target nodes)
        neighbors = jax.ops.segment_sum(
            jnp.ones((E,), dtype=jnp.int32), batch[i], num_segments=num_graphs
        )
        return (edge_index, edge_dist, distance_vec,
                cell_offsets, cell_offset_distances, neighbors)

    # TODO(synk): otf_graph=True (radius_graph) and use_pbc=True
    # (radius_graph_pbc / get_pbc_distances) paths are external graph-building
    # utilities, not part of this module's compute; not implemented here.
    def forward(self, data):
        raise NotImplementedError  # identical to the PyTorch module


# -----------------------------------------------------------------------------
# Demo / self-check
# -----------------------------------------------------------------------------
if __name__ == "__main__":
    key = jax.random.PRNGKey(0)
    N, E, G = 8, 16, 2                      # atoms, edges, graphs
    k1, _ = jax.random.split(key)
    pos = jax.random.normal(k1, (N, 3), dtype=jnp.float32) * 2.0
    # deterministic edge list within each graph (4 atoms per graph)
    src = jnp.array([0, 1, 2, 3, 0, 2, 1, 3, 4, 5, 6, 7, 4, 6, 5, 7], dtype=jnp.int32)
    dst = jnp.array([1, 0, 3, 2, 2, 0, 3, 1, 5, 4, 7, 6, 6, 4, 7, 5], dtype=jnp.int32)
    edge_index = jnp.stack([src, dst], axis=0)
    batch = jnp.array([0, 0, 0, 0, 1, 1, 1, 1], dtype=jnp.int32)

    model = BaseModelJAX(num_atoms=N, bond_feat_dim=16, num_targets=1)

    out = model.generate_graph(pos, edge_index, batch, num_graphs=G)
    out = jax.block_until_ready(out)
    (ei, edge_dist, distance_vec, cell_off, cell_off_dist, neighbors) = out

    # reference checks (plain numpy)
    pos_np = np.asarray(pos)
    ref_vec = pos_np[np.asarray(src)] - pos_np[np.asarray(dst)]
    ref_dist = np.linalg.norm(ref_vec, axis=-1)
    assert np.allclose(np.asarray(distance_vec), ref_vec, atol=1e-5)
    assert np.allclose(np.asarray(edge_dist), ref_dist, atol=1e-5)
    ref_ec = _ELECTRON_CONFIG / _ELECTRON_CONFIG[-1, :]
    assert np.allclose(np.asarray(model.electron_configs), ref_ec, atol=1e-5)
    assert np.array_equal(np.asarray(neighbors), np.array([8, 8], dtype=np.int32))
    assert cell_off.shape == (E, 3) and cell_off_dist.shape == (E, 3)

    print("KERNEL_OK")
</pallas_src>

<mosaic_0001>
module attributes {stable_mosaic.version = 11 : i64} {
  func.func @_edge_geometry_kernel(%arg0: i32, %arg1: memref<3x128xf32, #tpu.memory_space<vmem>>, %arg2: memref<3x128xf32, #tpu.memory_space<vmem>>, %arg3: memref<3x128xf32, #tpu.memory_space<vmem>>, %arg4: memref<1x128xf32, #tpu.memory_space<vmem>>) attributes {dimension_semantics = [#tpu.dimension_semantics<parallel>], iteration_bounds = array<i64: 1>, scalar_prefetch = 0 : i64, scratch_operands = 0 : i64, tpu.core_type = #tpu.core_type<tc>, window_params = [{transform_indices = @transform_0, window_bounds = array<i64: 3, 128>}, {transform_indices = @transform_1, window_bounds = array<i64: 3, 128>}, {transform_indices = @transform_2, window_bounds = array<i64: 3, 128>}, {transform_indices = @transform_3, window_bounds = array<i64: 1, 128>}]} {
    %c0 = arith.constant 0 : index
    %c0_0 = arith.constant 0 : index
    %0 = vector.load %arg1[%c0, %c0_0] : memref<3x128xf32, #tpu.memory_space<vmem>>, vector<3x128xf32>
    %c0_1 = arith.constant 0 : index
    %c0_2 = arith.constant 0 : index
    %1 = vector.load %arg2[%c0_1, %c0_2] : memref<3x128xf32, #tpu.memory_space<vmem>>, vector<3x128xf32>
    %2 = arith.subf %0, %1 : vector<3x128xf32>
    %c0_3 = arith.constant 0 : index
    %c0_4 = arith.constant 0 : index
    %3 = vector.load %arg3[%c0_3, %c0_4] : memref<3x128xf32, #tpu.memory_space<vmem>>, vector<3x128xf32>
    tpu.vector_store %arg3[%c0_3, %c0_4], %2 {strides = array<i32>} : memref<3x128xf32, #tpu.memory_space<vmem>>, vector<3x128xf32>,
    %4 = vector.extract_strided_slice %2 {offsets = [0, 0], sizes = [1, 128], strides = [1, 1]} : vector<3x128xf32> to vector<1x128xf32>
    %5 = vector.extract_strided_slice %2 {offsets = [1, 0], sizes = [1, 128], strides = [1, 1]} : vector<3x128xf32> to vector<1x128xf32>
    %6 = vector.extract_strided_slice %2 {offsets = [2, 0], sizes = [1, 128], strides = [1, 1]} : vector<3x128xf32> to vector<1x128xf32>
    %7 = arith.mulf %4, %4 : vector<1x128xf32>
    %8 = arith.mulf %5, %5 : vector<1x128xf32>
    %9 = arith.addf %7, %8 : vector<1x128xf32>
    %10 = arith.mulf %6, %6 : vector<1x128xf32>
    %11 = arith.addf %9, %10 : vector<1x128xf32>
    %12 = math.sqrt %11 : vector<1x128xf32>
    %c0_5 = arith.constant 0 : index
    %c0_6 = arith.constant 0 : index
    %13 = vector.load %arg4[%c0_5, %c0_6] : memref<1x128xf32, #tpu.memory_space<vmem>>, vector<1x128xf32>
    tpu.vector_store %arg4[%c0_5, %c0_6], %12 {strides = array<i32>} : memref<1x128xf32, #tpu.memory_space<vmem>>, vector<1x128xf32>,
    return
  }
  func.func @transform_0(%arg0: i32) -> (i32, i32) {
    %c0_i32 = arith.constant 0 : i32
    %c0_i32_0 = arith.constant 0 : i32
    return %c0_i32, %arg0 : i32, i32
  }
  func.func @transform_1(%arg0: i32) -> (i32, i32) {
    %c0_i32 = arith.constant 0 : i32
    %c0_i32_0 = arith.constant 0 : i32
    return %c0_i32, %arg0 : i32, i32
  }
  func.func @transform_2(%arg0: i32) -> (i32, i32) {
    %c0_i32 = arith.constant 0 : i32
    %c0_i32_0 = arith.constant 0 : i32
    return %c0_i32, %arg0 : i32, i32
  }
  func.func @transform_3(%arg0: i32) -> (i32, i32) {
    %c0_i32 = arith.constant 0 : i32
    %c0_i32_0 = arith.constant 0 : i32
    return %c0_i32, %arg0 : i32, i32
  }
}

</mosaic_0001>

<llo_original>
// kernel: _edge_geometry.1
$region0: #{_edge_geometry.1}
  #allocation0 [shape = 'u32[]', space=smem, size = 0x4, offset = 0x4, fixed_abs, tag = 'smem constant byte address 0x4 - core index']
  #allocation1 [shape = 'u32[72,128]{1,0:T(1,128)}', space=vmem, size = 0x9000, scoped, tag = 'internal scratch']
  %s0 = inlined_call_operand.vmem [shape: f32[3,128], index: 0, kind: input, shape index: {}]
  %s1 = inlined_call_operand.vmem [shape: f32[3,128], index: 1, kind: input, shape index: {}]
  %s2 = inlined_call_operand.vmem [shape: f32[3,128], index: 2, kind: output, shape index: {0}]
  %s3 = inlined_call_operand.vmem [shape: f32[1,128], index: 3, kind: output, shape index: {1}]
  %4 = xla_tuple %s2, %s3
  %s5 = sld [smem:[#allocation0]]
  $region26: #{_edge_geometry.1} parent=0
    _
  %s7 = ssub.s32 1, %s5
  %s8 = scalar_select 0, %s7, %s5
  // Predicated region
  $region2: #{_edge_geometry.1} parent=0 // pred_check
    _
  $region3: #{_edge_geometry.1} parent=0 // pred_check_branch
    %10 = sbr.rel (0) target = $region5
  $region4: #{_edge_geometry.1} parent=0 // pred_region
    _
  $region5: #{_edge_geometry.1} parent=0 // pred_fallthru
    _
  // Predicated region
  $region6: #{_edge_geometry.1} parent=0 // pred_check
    _
  $region7: #{_edge_geometry.1} parent=0 // pred_check_branch
    %12 = sbr.rel (0) target = $region9
  $region8: #{_edge_geometry.1} parent=0 // pred_region
    _
  $region9: #{_edge_geometry.1} parent=0 // pred_fallthru
    _
  %v13 = vld [vmem:[%s0] sm:$0x7]
  %v14 = vld [vmem:[%s1] sm:$0x7]
  %v15 = vsub.f32 %v13, %v14
  %16 = vst [vmem:[%s2] sm:$0x7] %v15
  %v17 = vmul.f32 %v15, %v15
  %v19 = vrot.slane %v17, 1
  %v21 = vadd.f32 %v17, %v19
  %v22 = vrot.slane %v17, 2
  %v24 = vadd.f32 %v21, %v22
  %v25 = vrsqrt.pop %v24
  %v26 = vmul.f32 %v25, %v24
  %v27 = vmul.f32 %v26, %v25
  %v28 = vmul.f32 0.5, %v27
  %v29 = vsub.f32 1.5, %v28
  %v30 = vmul.f32 %v25, %v29
  %v31 = vmul.f32 %v24, %v30
  %vm32 = vcmp.eq.f32.partialorder %v24, inf
  %v33 = vsel %vm32, %v24, %v31
  %vm34 = vcmp.eq.f32.partialorder %v24, 0.0
  %v35 = vand.u32 %v24, 2147483648
  %v36 = vsel %vm34, %v35, %v33
  %37 = vst [vmem:[%s3] sm:$0x1] %v36
  // Predicated region
  $region10: #{_edge_geometry.1} parent=0 // pred_check
    _
  $region11: #{_edge_geometry.1} parent=0 // pred_check_branch
    %39 = sbr.rel (0) target = $region13
  $region12: #{_edge_geometry.1} parent=0 // pred_region
    _
  $region13: #{_edge_geometry.1} parent=0 // pred_fallthru
    _
  // Predicated region
  $region14: #{_edge_geometry.1} parent=0 // pred_check
    _
  $region15: #{_edge_geometry.1} parent=0 // pred_check_branch
    %41 = sbr.rel (0) target = $region17
  $region16: #{_edge_geometry.1} parent=0 // pred_region
    _
  $region17: #{_edge_geometry.1} parent=0 // pred_fallthru
    _
  // Predicated region
  $region18: #{_edge_geometry.1} parent=0 // pred_check
    _
  $region19: #{_edge_geometry.1} parent=0 // pred_check_branch
    %43 = sbr.rel (0) target = $region21
  $region20: #{_edge_geometry.1} parent=0 // pred_region
    _
  $region21: #{_edge_geometry.1} parent=0 // pred_fallthru
    _
  // Predicated region
  $region22: #{_edge_geometry.1} parent=0 // pred_check
    _
  $region23: #{_edge_geometry.1} parent=0 // pred_check_branch
    %45 = sbr.rel (0) target = $region25
  $region24: #{_edge_geometry.1} parent=0 // pred_region
    _
  $region25: #{_edge_geometry.1} parent=0 // pred_fallthru
    _

</llo_original>
